<compile_context>
chip_gen: v6e
topology: v6e:2x2x1
jax: 0.10.0
libtpu: 0.0.40
codegen_flags: <defaults>
</compile_context>

<pallas_src>
import functools
import math

import jax
import jax.numpy as jnp
from jax.experimental import pallas as pl
from jax.experimental.pallas import tpu as pltpu


def _encoder_kernel(x_ref, w1_ref, b1_ref, w2_ref, b2_ref, o_ref):
    # x_ref:  (TILE_B, 784) bf16      w1_ref: (784, 30) bf16     b1_ref: (1, 30) f32
    # w2_ref: (30, N_PAD) f32         b2_ref: (1, N_PAD) f32 (-1e30 in padded lanes)
    # o_ref:  (TILE_B, N_PAD) f32
    x = x_ref[...]

    # Linear 1 + ReLU (bf16 MXU inputs, f32 accumulation)
    h = jnp.dot(x, w1_ref[...], preferred_element_type=jnp.float32) + b1_ref[...]
    h = jnp.maximum(h, 0.0)

    # Linear 2 (tiny; f32)
    logits = jnp.dot(h, w2_ref[...], preferred_element_type=jnp.float32) + b2_ref[...]

    # Numerically stable softmax over the (lane-padded) class axis.
    # Padded lanes have logit ~ -1e30, so exp underflows to exactly 0 and the
    # normalization over the real n classes is unchanged.
    m = jnp.max(logits, axis=-1, keepdims=True)
    e = jnp.exp(logits - m)
    o_ref[...] = (e / jnp.sum(e, axis=-1, keepdims=True)).astype(o_ref.dtype)


# Largest-tile-that-fits choice, safe across v5e/v6e/v7x:
#   bf16 x tile: 2048*784*2 B ~= 3.2 MiB (x2 double-buffered = 6.4 MiB)
#   f32 out tile: 2048*128*4 B = 1 MiB   (x2 = 2 MiB)      -> well under 16 MiB scoped.
_TILE_B = 2048


@functools.partial(jax.jit, static_argnames=("n",))
def mnist_encoder_forward(x, w1, b1, w2, b2, *, n):
    """x: (..., 1, 28, 28) float32 -> (..., n) float32 (softmax probabilities)."""
    original_shape = x.shape
    lead_shape = original_shape[: len(original_shape) - 3]
    x2d = x.reshape(-1, 784)
    batch = x2d.shape[0]

    # ---- lane-pad the class dimension to a multiple of 128 ----
    n_pad = max(128, pl.cdiv(n, 128) * 128)
    w2p = jnp.pad(w2, ((0, 0), (0, n_pad - n)))                          # zero weights
    b2p = jnp.pad(b2, ((0, 0), (0, n_pad - n)), constant_values=-1e30)   # -inf-ish bias

    # ---- pad batch to a multiple of the tile (zeros => well-defined padded rows) ----
    if batch <= _TILE_B:
        tile_b = max(8, ((batch + 7) // 8) * 8)
        b_pad = tile_b
    else:
        tile_b = _TILE_B
        b_pad = pl.cdiv(batch, tile_b) * tile_b
    if b_pad != batch:
        x2d = jnp.pad(x2d, ((0, b_pad - batch), (0, 0)))

    # ---- bf16 stream for the bandwidth-dominant operands ----
    x_bf = x2d.astype(jnp.bfloat16)
    w1_bf = w1.astype(jnp.bfloat16)

    grid = (b_pad // tile_b,)

    out = pl.pallas_call(
        _encoder_kernel,
        out_shape=jax.ShapeDtypeStruct((b_pad, n_pad), jnp.float32),
        grid=grid,
        in_specs=[
            pl.BlockSpec((tile_b, 784), lambda i: (i, 0)),   # streamed
            pl.BlockSpec((784, 30), lambda i: (0, 0)),       # resident
            pl.BlockSpec((1, 30), lambda i: (0, 0)),         # resident
            pl.BlockSpec((30, n_pad), lambda i: (0, 0)),     # resident
            pl.BlockSpec((1, n_pad), lambda i: (0, 0)),      # resident
        ],
        out_specs=pl.BlockSpec((tile_b, n_pad), lambda i: (i, 0)),
        compiler_params=pltpu.CompilerParams(
            dimension_semantics=("parallel",),
            vmem_limit_bytes=64 * 1024 * 1024,
        ),
        cost_estimate=pl.CostEstimate(
            flops=2 * b_pad * 784 * 30 + 2 * b_pad * 30 * n_pad,
            transcendentals=b_pad * n_pad,
            bytes_accessed=(b_pad * 784 * 2            # bf16 x in
                            + b_pad * n_pad * 4        # f32 out
                            + 784 * 30 * 2             # bf16 w1
                            + 30 * n_pad * 4           # f32 w2
                            + (30 + n_pad) * 4),       # biases
        ),
    )(x_bf, w1_bf, b1, w2p, b2p)

    out = out[:batch, :n]
    return out.reshape(*lead_shape, n)


def init_params(key, n):
    """Deterministic init mirroring torch.nn.Linear defaults.
    Weights are stored as [in_features, out_features] (transposed vs torch)."""
    k1, k2, k3, k4 = jax.random.split(key, 4)
    bound1 = 1.0 / math.sqrt(784.0)
    bound2 = 1.0 / math.sqrt(30.0)
    w1 = jax.random.uniform(k1, (784, 30), jnp.float32, -bound1, bound1)
    b1 = jax.random.uniform(k2, (1, 30), jnp.float32, -bound1, bound1)
    w2 = jax.random.uniform(k3, (30, n), jnp.float32, -bound2, bound2)
    b2 = jax.random.uniform(k4, (1, n), jnp.float32, -bound2, bound2)
    return w1, b1, w2, b2


if __name__ == "__main__":
    n = 10          # number of output classes (the `n` ctor arg)
    batch = 2       # leading batch dim

    key = jax.random.PRNGKey(0)
    kx, kp = jax.random.split(key)

    # Input consistent with x.view(-1, 784): (batch, 1, 28, 28) in NCHW.
    x = jax.random.normal(kx, (batch, 1, 28, 28), jnp.float32)
    w1, b1, w2, b2 = init_params(kp, n)

    out = mnist_encoder_forward(x, w1, b1, w2, b2, n=n)
    out = jax.block_until_ready(out)

    # Reference in plain JAX using the same bf16-input / f32-accumulate math.
    xr = x.reshape(-1, 784).astype(jnp.bfloat16)
    w1_bf = w1.astype(jnp.bfloat16)
    h = jnp.maximum(jnp.dot(xr, w1_bf, preferred_element_type=jnp.float32) + b1, 0.0)
    logits = jnp.dot(h, w2, preferred_element_type=jnp.float32) + b2
    ref = jax.nn.softmax(logits, axis=-1).reshape(batch, n)

    assert out.shape == (batch, n), out.shape
    assert jnp.allclose(out, ref, atol=2e-3, rtol=2e-3), "mismatch vs reference"
    assert jnp.allclose(jnp.sum(out, axis=-1), 1.0, atol=1e-5), "softmax rows must sum to 1"
    assert bool(jnp.all(jnp.isfinite(out))), "non-finite values in output"

    print("KERNEL_OK")
</pallas_src>

<mosaic_0001>
module attributes {stable_mosaic.version = 11 : i64} {
  func.func @_encoder_kernel(%arg0: i32, %arg1: memref<8x784xbf16, #tpu.memory_space<vmem>>, %arg2: memref<784x30xbf16, #tpu.memory_space<vmem>>, %arg3: memref<1x30xf32, #tpu.memory_space<vmem>>, %arg4: memref<30x128xf32, #tpu.memory_space<vmem>>, %arg5: memref<1x128xf32, #tpu.memory_space<vmem>>, %arg6: memref<8x128xf32, #tpu.memory_space<vmem>>) attributes {dimension_semantics = [#tpu.dimension_semantics<parallel>], iteration_bounds = array<i64: 1>, scalar_prefetch = 0 : i64, scratch_operands = 0 : i64, tpu.core_type = #tpu.core_type<tc>, window_params = [{transform_indices = @transform_0, window_bounds = array<i64: 8, 784>}, {pipeline_mode = #tpu.pipeline_mode<synchronous>, transform_indices = @transform_1, window_bounds = array<i64: 784, 30>}, {pipeline_mode = #tpu.pipeline_mode<synchronous>, transform_indices = @transform_2, window_bounds = array<i64: 1, 30>}, {pipeline_mode = #tpu.pipeline_mode<synchronous>, transform_indices = @transform_3, window_bounds = array<i64: 30, 128>}, {pipeline_mode = #tpu.pipeline_mode<synchronous>, transform_indices = @transform_4, window_bounds = array<i64: 1, 128>}, {transform_indices = @transform_5, window_bounds = array<i64: 8, 128>}]} {
    %c0 = arith.constant 0 : index
    %c0_0 = arith.constant 0 : index
    %0 = vector.load %arg1[%c0, %c0_0] : memref<8x784xbf16, #tpu.memory_space<vmem>>, vector<8x784xbf16>
    %c0_1 = arith.constant 0 : index
    %c0_2 = arith.constant 0 : index
    %1 = vector.load %arg2[%c0_1, %c0_2] : memref<784x30xbf16, #tpu.memory_space<vmem>>, vector<784x30xbf16>
    %cst = arith.constant dense<0.000000e+00> : vector<8x30xf32>
    %2 = tpu.matmul %0, %1, %cst {dimension_numbers = #tpu.dot_dimension_numbers<[1], [0], [0], [1], [0, 0, 1, 1], [], []>} : vector<8x784xbf16>, vector<784x30xbf16>, vector<8x30xf32> -> vector<8x30xf32>
    %c0_3 = arith.constant 0 : index
    %c0_4 = arith.constant 0 : index
    %3 = vector.load %arg3[%c0_3, %c0_4] : memref<1x30xf32, #tpu.memory_space<vmem>>, vector<1x30xf32>
    %4 = vector.broadcast %3 : vector<1x30xf32> to vector<8x30xf32>
    %5 = arith.addf %2, %4 : vector<8x30xf32>
    %cst_5 = arith.constant 0.000000e+00 : f32
    %6 = vector.broadcast %cst_5 : f32 to vector<8x30xf32>
    %7 = arith.maximumf %5, %6 : vector<8x30xf32>
    %c0_6 = arith.constant 0 : index
    %c0_7 = arith.constant 0 : index
    %8 = vector.load %arg4[%c0_6, %c0_7] : memref<30x128xf32, #tpu.memory_space<vmem>>, vector<30x128xf32>
    %cst_8 = arith.constant dense<0.000000e+00> : vector<8x128xf32>
    %9 = tpu.matmul %7, %8, %cst_8 {dimension_numbers = #tpu.dot_dimension_numbers<[1], [0], [0], [1], [0, 0, 1, 1], [], []>} : vector<8x30xf32>, vector<30x128xf32>, vector<8x128xf32> -> vector<8x128xf32>
    %c0_9 = arith.constant 0 : index
    %c0_10 = arith.constant 0 : index
    %10 = vector.load %arg5[%c0_9, %c0_10] : memref<1x128xf32, #tpu.memory_space<vmem>>, vector<1x128xf32>
    %11 = vector.broadcast %10 : vector<1x128xf32> to vector<8x128xf32>
    %12 = arith.addf %9, %11 : vector<8x128xf32>
    %cst_11 = arith.constant dense<0xFF800000> : vector<8xf32>
    %13 = vector.multi_reduction <maximumf>, %12, %cst_11 [1] : vector<8x128xf32> to vector<8xf32>
    %14 = vector.shape_cast %13 : vector<8xf32> to vector<8x1xf32>
    %15 = vector.broadcast %14 : vector<8x1xf32> to vector<8x128xf32>
    %16 = arith.subf %12, %15 : vector<8x128xf32>
    %17 = math.exp %16 : vector<8x128xf32>
    %cst_12 = arith.constant dense<0.000000e+00> : vector<8xf32>
    %18 = vector.multi_reduction <add>, %17, %cst_12 [1] : vector<8x128xf32> to vector<8xf32>
    %19 = vector.shape_cast %18 : vector<8xf32> to vector<8x1xf32>
    %20 = vector.broadcast %19 : vector<8x1xf32> to vector<8x128xf32>
    %21 = arith.divf %17, %20 : vector<8x128xf32>
    %c0_13 = arith.constant 0 : index
    %c0_14 = arith.constant 0 : index
    %22 = vector.load %arg6[%c0_13, %c0_14] : memref<8x128xf32, #tpu.memory_space<vmem>>, vector<8x128xf32>
    tpu.vector_store %arg6[%c0_13, %c0_14], %21 {strides = array<i32>} : memref<8x128xf32, #tpu.memory_space<vmem>>, vector<8x128xf32>,
    return
  }
  func.func @transform_0(%arg0: i32) -> (i32, i32) {
    %c0_i32 = arith.constant 0 : i32
    %c0_i32_0 = arith.constant 0 : i32
    return %arg0, %c0_i32 : i32, i32
  }
  func.func @transform_1(%arg0: i32) -> (i32, i32) {
    %c0_i32 = arith.constant 0 : i32
    %c0_i32_0 = arith.constant 0 : i32
    %c0_i32_1 = arith.constant 0 : i32
    return %c0_i32, %c0_i32_0 : i32, i32
  }
  func.func @transform_2(%arg0: i32) -> (i32, i32) {
    %c0_i32 = arith.constant 0 : i32
    %c0_i32_0 = arith.constant 0 : i32
    %c0_i32_1 = arith.constant 0 : i32
    return %c0_i32, %c0_i32_0 : i32, i32
  }
  func.func @transform_3(%arg0: i32) -> (i32, i32) {
    %c0_i32 = arith.constant 0 : i32
    %c0_i32_0 = arith.constant 0 : i32
    %c0_i32_1 = arith.constant 0 : i32
    return %c0_i32, %c0_i32_0 : i32, i32
  }
  func.func @transform_4(%arg0: i32) -> (i32, i32) {
    %c0_i32 = arith.constant 0 : i32
    %c0_i32_0 = arith.constant 0 : i32
    %c0_i32_1 = arith.constant 0 : i32
    return %c0_i32, %c0_i32_0 : i32, i32
  }
  func.func @transform_5(%arg0: i32) -> (i32, i32) {
    %c0_i32 = arith.constant 0 : i32
    %c0_i32_0 = arith.constant 0 : i32
    return %arg0, %c0_i32 : i32, i32
  }
}

</mosaic_0001>

<llo_original>
// kernel: mnist_encoder_forward.1
$region0: #{mnist_encoder_forward.1}
  #allocation0 [shape = 'u32[]', space=smem, size = 0x4, offset = 0x4, fixed_abs, tag = 'smem constant byte address 0x4 - core index']
  #allocation1 [shape = 'u32[144,128]{1,0:T(1,128)}', space=vmem, size = 0x12000, scoped, tag = 'internal scratch']
  %s0 = inlined_call_operand.vmem [shape: bf16[8,784], index: 0, kind: input, shape index: {}]
  %s1 = inlined_call_operand.vmem [shape: bf16[784,30], index: 1, kind: input, shape index: {}]
  %s2 = inlined_call_operand.vmem [shape: f32[1,30], index: 2, kind: input, shape index: {}]
  %s3 = inlined_call_operand.vmem [shape: f32[30,128], index: 3, kind: input, shape index: {}]
  %s4 = inlined_call_operand.vmem [shape: f32[1,128], index: 4, kind: input, shape index: {}]
  %s5 = inlined_call_operand.vmem [shape: f32[8,128], index: 5, kind: output, shape index: {}]
  %s6 = sld [smem:[#allocation0]]
  $region30: #{mnist_encoder_forward.1} parent=0
    _
  %s8 = ssub.s32 1, %s6
  %s9 = scalar_select 0, %s8, %s6
  // Predicated region
  $region2: #{mnist_encoder_forward.1} parent=0 // pred_check
    _
  $region3: #{mnist_encoder_forward.1} parent=0 // pred_check_branch
    %11 = sbr.rel (0) target = $region5
  $region4: #{mnist_encoder_forward.1} parent=0 // pred_region
    _
  $region5: #{mnist_encoder_forward.1} parent=0 // pred_fallthru
    _
  // Predicated region
  $region6: #{mnist_encoder_forward.1} parent=0 // pred_check
    _
  $region7: #{mnist_encoder_forward.1} parent=0 // pred_check_branch
    %13 = sbr.rel (0) target = $region9
  $region8: #{mnist_encoder_forward.1} parent=0 // pred_region
    _
  $region9: #{mnist_encoder_forward.1} parent=0 // pred_fallthru
    _
  // Predicated region
  $region10: #{mnist_encoder_forward.1} parent=0 // pred_check
    _
  $region11: #{mnist_encoder_forward.1} parent=0 // pred_check_branch
    %15 = sbr.rel (0) target = $region13
  $region12: #{mnist_encoder_forward.1} parent=0 // pred_region
    _
  $region13: #{mnist_encoder_forward.1} parent=0 // pred_fallthru
    _
  // Predicated region
  $region14: #{mnist_encoder_forward.1} parent=0 // pred_check
    _
  $region15: #{mnist_encoder_forward.1} parent=0 // pred_check_branch
    %17 = sbr.rel (0) target = $region17
  $region16: #{mnist_encoder_forward.1} parent=0 // pred_region
    _
  $region17: #{mnist_encoder_forward.1} parent=0 // pred_fallthru
    _
  // Predicated region
  $region18: #{mnist_encoder_forward.1} parent=0 // pred_check
    _
  $region19: #{mnist_encoder_forward.1} parent=0 // pred_check_branch
    %19 = sbr.rel (0) target = $region21
  $region20: #{mnist_encoder_forward.1} parent=0 // pred_region
    _
  $region21: #{mnist_encoder_forward.1} parent=0 // pred_fallthru
    _
  %v21 = vld [vmem:[%s0] sm:$0xff]
  %v22 = vld [vmem:[%s0 + $0x8] sm:$0xff]
  %v23 = vld [vmem:[%s0 + $0x10] sm:$0xff]
  %v24 = vld [vmem:[%s0 + $0x18] sm:$0xf]
  %v25 = vld [vmem:[%s1] sm:$0xf]
  %v26 = vld [vmem:[%s1 + $0x4] sm:$0xf]
  %v27 = vld [vmem:[%s1 + $0x8] sm:$0xf]
  %v28 = vld [vmem:[%s1 + $0xc] sm:$0xf]
  %v29 = vld [vmem:[%s1 + $0x10] sm:$0xf]
  %v30 = vld [vmem:[%s1 + $0x14] sm:$0xf]
  %v31 = vld [vmem:[%s1 + $0x18] sm:$0xf]
  %v32 = vld [vmem:[%s1 + $0x1c] sm:$0xf]
  %v33 = vld [vmem:[%s1 + $0x20] sm:$0xf]
  %v34 = vld [vmem:[%s1 + $0x24] sm:$0xf]
  %v35 = vld [vmem:[%s1 + $0x28] sm:$0xf]
  %v36 = vld [vmem:[%s1 + $0x2c] sm:$0xf]
  %v37 = vld [vmem:[%s1 + $0x30] sm:$0xf]
  %v38 = vld [vmem:[%s1 + $0x34] sm:$0xf]
  %v39 = vld [vmem:[%s1 + $0x38] sm:$0xf]
  %v40 = vld [vmem:[%s1 + $0x3c] sm:$0xf]
  %v41 = vld [vmem:[%s1 + $0x40] sm:$0xf]
  %v42 = vld [vmem:[%s1 + $0x44] sm:$0xf]
  %v43 = vld [vmem:[%s1 + $0x48] sm:$0xf]
  %v44 = vld [vmem:[%s1 + $0x4c] sm:$0xf]
  %v45 = vld [vmem:[%s1 + $0x50] sm:$0xf]
  %v46 = vld [vmem:[%s1 + $0x54] sm:$0xf]
  %v47 = vld [vmem:[%s1 + $0x58] sm:$0xf]
  %v48 = vld [vmem:[%s1 + $0x5c] sm:$0xf]
  %v49 = vld [vmem:[%s1 + $0x60] sm:$0xf]
  %v50 = vld [vmem:[%s1 + $0x64] sm:$0xf]
  %v51 = vld [vmem:[%s1 + $0x68] sm:$0xf]
  %v52 = vld [vmem:[%s1 + $0x6c] sm:$0xf]
  %v53 = vld [vmem:[%s1 + $0x70] sm:$0xf]
  %v54 = vld [vmem:[%s1 + $0x74] sm:$0xf]
  %v55 = vld [vmem:[%s1 + $0x78] sm:$0xf]
  %v56 = vld [vmem:[%s1 + $0x7c] sm:$0xf]
  %v57 = vld [vmem:[%s1 + $0x80] sm:$0xf]
  %v58 = vld [vmem:[%s1 + $0x84] sm:$0xf]
  %v59 = vld [vmem:[%s1 + $0x88] sm:$0xf]
  %v60 = vld [vmem:[%s1 + $0x8c] sm:$0xf]
  %v61 = vld [vmem:[%s1 + $0x90] sm:$0xf]
  %v62 = vld [vmem:[%s1 + $0x94] sm:$0xf]
  %v63 = vld [vmem:[%s1 + $0x98] sm:$0xf]
  %v64 = vld [vmem:[%s1 + $0x9c] sm:$0xf]
  %v65 = vld [vmem:[%s1 + $0xa0] sm:$0xf]
  %v66 = vld [vmem:[%s1 + $0xa4] sm:$0xf]
  %v67 = vld [vmem:[%s1 + $0xa8] sm:$0xf]
  %v68 = vld [vmem:[%s1 + $0xac] sm:$0xf]
  %v69 = vld [vmem:[%s1 + $0xb0] sm:$0xf]
  %v70 = vld [vmem:[%s1 + $0xb4] sm:$0xf]
  %v71 = vld [vmem:[%s1 + $0xb8] sm:$0xf]
  %v72 = vld [vmem:[%s1 + $0xbc] sm:$0xf]
  %v73 = vld [vmem:[%s1 + $0xc0] sm:$0xf]
  %v74 = vld [vmem:[%s1 + $0xc4] sm:$0xf]
  %v75 = vld [vmem:[%s1 + $0xc8] sm:$0xf]
  %v76 = vld [vmem:[%s1 + $0xcc] sm:$0xf]
  %v77 = vld [vmem:[%s1 + $0xd0] sm:$0xf]
  %v78 = vld [vmem:[%s1 + $0xd4] sm:$0xf]
  %v79 = vld [vmem:[%s1 + $0xd8] sm:$0xf]
  %v80 = vld [vmem:[%s1 + $0xdc] sm:$0xf]
  %v81 = vld [vmem:[%s1 + $0xe0] sm:$0xf]
  %v82 = vld [vmem:[%s1 + $0xe4] sm:$0xf]
  %v83 = vld [vmem:[%s1 + $0xe8] sm:$0xf]
  %v84 = vld [vmem:[%s1 + $0xec] sm:$0xf]
  %v85 = vld [vmem:[%s1 + $0xf0] sm:$0xf]
  %v86 = vld [vmem:[%s1 + $0xf4] sm:$0xf]
  %v87 = vld [vmem:[%s1 + $0xf8] sm:$0xf]
  %v88 = vld [vmem:[%s1 + $0xfc] sm:$0xf]
  %v89 = vld [vmem:[%s1 + $0x100] sm:$0xf]
  %v90 = vld [vmem:[%s1 + $0x104] sm:$0xf]
  %v91 = vld [vmem:[%s1 + $0x108] sm:$0xf]
  %v92 = vld [vmem:[%s1 + $0x10c] sm:$0xf]
  %v93 = vld [vmem:[%s1 + $0x110] sm:$0xf]
  %v94 = vld [vmem:[%s1 + $0x114] sm:$0xf]
  %v95 = vld [vmem:[%s1 + $0x118] sm:$0xf]
  %v96 = vld [vmem:[%s1 + $0x11c] sm:$0xf]
  %v97 = vld [vmem:[%s1 + $0x120] sm:$0xf]
  %v98 = vld [vmem:[%s1 + $0x124] sm:$0xf]
  %v99 = vld [vmem:[%s1 + $0x128] sm:$0xf]
  %v100 = vld [vmem:[%s1 + $0x12c] sm:$0xf]
  %v101 = vld [vmem:[%s1 + $0x130] sm:$0xf]
  %v102 = vld [vmem:[%s1 + $0x134] sm:$0xf]
  %v103 = vld [vmem:[%s1 + $0x138] sm:$0xf]
  %v104 = vld [vmem:[%s1 + $0x13c] sm:$0xf]
  %v105 = vld [vmem:[%s1 + $0x140] sm:$0xf]
  %v106 = vld [vmem:[%s1 + $0x144] sm:$0xf]
  %v107 = vld [vmem:[%s1 + $0x148] sm:$0xf]
  %v108 = vld [vmem:[%s1 + $0x14c] sm:$0xf]
  %v109 = vld [vmem:[%s1 + $0x150] sm:$0xf]
  %v110 = vld [vmem:[%s1 + $0x154] sm:$0xf]
  %v111 = vld [vmem:[%s1 + $0x158] sm:$0xf]
  %v112 = vld [vmem:[%s1 + $0x15c] sm:$0xf]
  %v113 = vld [vmem:[%s1 + $0x160] sm:$0xf]
  %v114 = vld [vmem:[%s1 + $0x164] sm:$0xf]
  %v115 = vld [vmem:[%s1 + $0x168] sm:$0xf]
  %v116 = vld [vmem:[%s1 + $0x16c] sm:$0xf]
  %v117 = vld [vmem:[%s1 + $0x170] sm:$0xf]
  %v118 = vld [vmem:[%s1 + $0x174] sm:$0xf]
  %v119 = vld [vmem:[%s1 + $0x178] sm:$0xf]
  %v120 = vld [vmem:[%s1 + $0x17c] sm:$0xf]
  %v121 = vld [vmem:[%s1 + $0x180] sm:$0xf]
  %v122 = vld [vmem:[%s1 + $0x184] sm:$0xf]
  %v123 = vld [vmem:[%s2] sm:$0x1]
  %v125 = vlaneseq
  %v126 = vshrl.u32 %v125, 7
  %v127 = vsub.s32 0, %v126
  %v128 = vrot.slane %v123, %v127
  %v134 = vunpack.c.l.b16 %v21
  %v135 = vunpack.c.h.b16 %v21
  %v136 = vunpack.c.l.b16 %v22
  %v137 = vunpack.c.h.b16 %v22
  %v138 = vunpack.c.l.b16 %v23
  %v139 = vunpack.c.h.b16 %v23
  %v140 = vunpack.c.l.b16 %v24
  %v141 = vpack.c.b16 %v134, %v134
  %v142 = vpack.c.b16 %v135, %v135
  %v143 = vpack.c.b16 %v136, %v136
  %v144 = vpack.c.b16 %v137, %v137
  %v145 = vpack.c.b16 %v138, %v138
  %v146 = vpack.c.b16 %v139, %v139
  %v147 = vpack.c.b16 %v140, %v140
  %v252 = vunpack.c.l.b16 %v25
  %v253 = vunpack.c.l.b16 %v26
  %v254 = vunpack.c.l.b16 %v27
  %v255 = vunpack.c.l.b16 %v28
  %v256 = vunpack.c.l.b16 %v29
  %v257 = vunpack.c.l.b16 %v30
  %v258 = vunpack.c.l.b16 %v31
  %v259 = vunpack.c.l.b16 %v32
  %v260 = vunpack.c.l.b16 %v33
  %v261 = vunpack.c.l.b16 %v34
  %v262 = vunpack.c.l.b16 %v35
  %v263 = vunpack.c.l.b16 %v36
  %v264 = vunpack.c.l.b16 %v37
  %v265 = vunpack.c.l.b16 %v38
  %v266 = vunpack.c.l.b16 %v39
  %v267 = vunpack.c.l.b16 %v40
  %v268 = vunpack.c.l.b16 %v41
  %v269 = vunpack.c.l.b16 %v42
  %v270 = vunpack.c.l.b16 %v43
  %v271 = vunpack.c.l.b16 %v44
  %v272 = vunpack.c.l.b16 %v45
  %v273 = vunpack.c.l.b16 %v46
  %v274 = vunpack.c.l.b16 %v47
  %v275 = vunpack.c.l.b16 %v48
  %v276 = vunpack.c.l.b16 %v49
  %v277 = vunpack.c.l.b16 %v50
  %v278 = vunpack.c.l.b16 %v51
  %v279 = vunpack.c.l.b16 %v52
  %v280 = vunpack.c.l.b16 %v53
  %v281 = vunpack.c.l.b16 %v54
  %v282 = vunpack.c.l.b16 %v55
  %v283 = vunpack.c.l.b16 %v56
  %v284 = vunpack.c.l.b16 %v57
  %v285 = vunpack.c.l.b16 %v58
  %v286 = vunpack.c.l.b16 %v59
  %v287 = vunpack.c.l.b16 %v60
  %v288 = vunpack.c.l.b16 %v61
  %v289 = vunpack.c.l.b16 %v62
  %v290 = vunpack.c.l.b16 %v63
  %v291 = vunpack.c.l.b16 %v64
  %v292 = vunpack.c.l.b16 %v65
  %v293 = vunpack.c.l.b16 %v66
  %v294 = vunpack.c.l.b16 %v67
  %v295 = vunpack.c.l.b16 %v68
  %v296 = vunpack.c.l.b16 %v69
  %v297 = vunpack.c.l.b16 %v70
  %v298 = vunpack.c.l.b16 %v71
  %v299 = vunpack.c.l.b16 %v72
  %v300 = vunpack.c.l.b16 %v73
  %v301 = vunpack.c.l.b16 %v74
  %v302 = vunpack.c.l.b16 %v75
  %v303 = vunpack.c.l.b16 %v76
  %v304 = vunpack.c.l.b16 %v77
  %v305 = vunpack.c.l.b16 %v78
  %v306 = vunpack.c.l.b16 %v79
  %v307 = vunpack.c.l.b16 %v80
  %v308 = vunpack.c.l.b16 %v81
  %v309 = vunpack.c.l.b16 %v82
  %v310 = vunpack.c.l.b16 %v83
  %v311 = vunpack.c.l.b16 %v84
  %v312 = vunpack.c.l.b16 %v85
  %v313 = vunpack.c.l.b16 %v86
  %v314 = vunpack.c.l.b16 %v87
  %v315 = vunpack.c.l.b16 %v88
  %v316 = vunpack.c.l.b16 %v89
  %v317 = vunpack.c.l.b16 %v90
  %v318 = vunpack.c.l.b16 %v91
  %v319 = vunpack.c.l.b16 %v92
  %v320 = vunpack.c.l.b16 %v93
  %v321 = vunpack.c.l.b16 %v94
  %v322 = vunpack.c.l.b16 %v95
  %v323 = vunpack.c.l.b16 %v96
  %v324 = vunpack.c.l.b16 %v97
  %v325 = vunpack.c.l.b16 %v98
  %v326 = vunpack.c.l.b16 %v99
  %v327 = vunpack.c.l.b16 %v100
  %v328 = vunpack.c.l.b16 %v101
  %v329 = vunpack.c.l.b16 %v102
  %v330 = vunpack.c.l.b16 %v103
  %v331 = vunpack.c.l.b16 %v104
  %v332 = vunpack.c.l.b16 %v105
  %v333 = vunpack.c.l.b16 %v106
  %v334 = vunpack.c.l.b16 %v107
  %v335 = vunpack.c.l.b16 %v108
  %v336 = vunpack.c.l.b16 %v109
  %v337 = vunpack.c.l.b16 %v110
  %v338 = vunpack.c.l.b16 %v111
  %v339 = vunpack.c.l.b16 %v112
  %v340 = vunpack.c.l.b16 %v113
  %v341 = vunpack.c.l.b16 %v114
  %v342 = vunpack.c.l.b16 %v115
  %v343 = vunpack.c.l.b16 %v116
  %v344 = vunpack.c.l.b16 %v117
  %v345 = vunpack.c.l.b16 %v118
  %v346 = vunpack.c.l.b16 %v119
  %v347 = vunpack.c.l.b16 %v120
  %v348 = vunpack.c.l.b16 %v121
  %v349 = vunpack.c.l.b16 %v122
  %v350 = vpack.c.b16 %v253, %v252
  %v351 = vpack.c.b16 %v255, %v254
  %v352 = vpack.c.b16 %v257, %v256
  %v353 = vpack.c.b16 %v259, %v258
  %v354 = vpack.c.b16 %v261, %v260
  %v355 = vpack.c.b16 %v263, %v262
  %v356 = vpack.c.b16 %v265, %v264
  %v357 = vpack.c.b16 %v267, %v266
  %v358 = vpack.c.b16 %v269, %v268
  %v359 = vpack.c.b16 %v271, %v270
  %v360 = vpack.c.b16 %v273, %v272
  %v361 = vpack.c.b16 %v275, %v274
  %v362 = vpack.c.b16 %v277, %v276
  %v363 = vpack.c.b16 %v279, %v278
  %v364 = vpack.c.b16 %v281, %v280
  %v365 = vpack.c.b16 %v283, %v282
  %v366 = vpack.c.b16 %v285, %v284
  %v367 = vpack.c.b16 %v287, %v286
  %v368 = vpack.c.b16 %v289, %v288
  %v369 = vpack.c.b16 %v291, %v290
  %v370 = vpack.c.b16 %v293, %v292
  %v371 = vpack.c.b16 %v295, %v294
  %v372 = vpack.c.b16 %v297, %v296
  %v373 = vpack.c.b16 %v299, %v298
  %v374 = vpack.c.b16 %v301, %v300
  %v375 = vpack.c.b16 %v303, %v302
  %v376 = vpack.c.b16 %v305, %v304
  %v377 = vpack.c.b16 %v307, %v306
  %v378 = vpack.c.b16 %v309, %v308
  %v379 = vpack.c.b16 %v311, %v310
  %v380 = vpack.c.b16 %v313, %v312
  %v381 = vpack.c.b16 %v315, %v314
  %v382 = vpack.c.b16 %v317, %v316
  %v383 = vpack.c.b16 %v319, %v318
  %v384 = vpack.c.b16 %v321, %v320
  %v385 = vpack.c.b16 %v323, %v322
  %v386 = vpack.c.b16 %v325, %v324
  %v387 = vpack.c.b16 %v327, %v326
  %v388 = vpack.c.b16 %v329, %v328
  %v389 = vpack.c.b16 %v331, %v330
  %v390 = vpack.c.b16 %v333, %v332
  %v391 = vpack.c.b16 %v335, %v334
  %v392 = vpack.c.b16 %v337, %v336
  %v393 = vpack.c.b16 %v339, %v338
  %v394 = vpack.c.b16 %v341, %v340
  %v395 = vpack.c.b16 %v343, %v342
  %v396 = vpack.c.b16 %v345, %v344
  %v397 = vpack.c.b16 %v347, %v346
  %v398 = vpack.c.b16 %v349, %v348
  %vm448 = vcmask 130048
  %v450 = vsel %vm448, %v147, 0
  %452 = vmatprep.subr.bf16.mxu0 0
  %453 = vmatpush1.bf16.msra.mxu0 %v357
  %454 = vmatprep.subr.bf16.mxu0 0
  %455 = vmatpush1.bf16.msra.mxu0 %v356
  %456 = vmatprep.subr.bf16.mxu0 0
  %457 = vmatpush1.bf16.msra.mxu0 %v355
  %458 = vmatprep.subr.bf16.mxu0 0
  %459 = vmatpush1.bf16.msra.mxu0 %v354
  %460 = vmatprep.subr.bf16.mxu0 0
  %461 = vmatpush1.bf16.msra.mxu0 %v353
  %462 = vmatprep.subr.bf16.mxu0 0
  %463 = vmatpush1.bf16.msra.mxu0 %v352
  %464 = vmatprep.subr.bf16.mxu0 0
  %465 = vmatpush1.bf16.msra.mxu0 %v351
  %466 = vmatprep.subr.bf16.mxu0 0
  %467 = vmatpush1.bf16.msra.mxu0 %v350
  %468 = vmatprep.subr.bf16.mxu0 0
  %469 = vmatpush2.bf16.msra.mxu0 %v365
  %470 = vmatprep.subr.bf16.mxu0 0
  %471 = vmatpush2.bf16.msra.mxu0 %v364
  %472 = vmatprep.subr.bf16.mxu0 0
  %473 = vmatpush2.bf16.msra.mxu0 %v363
  %474 = vmatprep.subr.bf16.mxu0 0
  %475 = vmatpush2.bf16.msra.mxu0 %v362
  %476 = vmatprep.subr.bf16.mxu0 0
  %477 = vmatpush2.bf16.msra.mxu0 %v361
  %478 = vmatprep.subr.bf16.mxu0 0
  %479 = vmatpush2.bf16.msra.mxu0 %v360
  %480 = vmatprep.subr.bf16.mxu0 0
  %481 = vmatpush2.bf16.msra.mxu0 %v359
  %482 = vmatprep.subr.bf16.mxu0 0
  %483 = vmatpush2.bf16.msra.mxu0 %v358
  %484 = vmatprep.mubr.bf16.mxu0 %v142
  %485 = vmatmul.mubr.bf16.gmra.mxu0 %v141
  %v486 = vpop.f32.mrf.mxu0
  %v487 = vadd.f32 %v128, %v486
  %v488 = vpop.f32.mrf.mxu0
  %v489 = vpop.f32.mrf.mxu0
  %v490 = vpop.f32.mrf.mxu0
  %491 = vdwg.mxu0
  %492 = vmatprep.subr.bf16.mxu0 0
  %493 = vmatpush1.bf16.msra.mxu0 %v373
  %494 = vmatprep.subr.bf16.mxu0 0
  %495 = vmatpush1.bf16.msra.mxu0 %v372
  %496 = vmatprep.subr.bf16.mxu0 0
  %497 = vmatpush1.bf16.msra.mxu0 %v371
  %498 = vmatprep.subr.bf16.mxu0 0
  %499 = vmatpush1.bf16.msra.mxu0 %v370
  %500 = vmatprep.subr.bf16.mxu0 0
  %501 = vmatpush1.bf16.msra.mxu0 %v369
  %502 = vmatprep.subr.bf16.mxu0 0
  %503 = vmatpush1.bf16.msra.mxu0 %v368
  %504 = vmatprep.subr.bf16.mxu0 0
  %505 = vmatpush1.bf16.msra.mxu0 %v367
  %506 = vmatprep.subr.bf16.mxu0 0
  %507 = vmatpush1.bf16.msra.mxu0 %v366
  %508 = vmatprep.subr.bf16.mxu0 0
  %509 = vmatpush2.bf16.msra.mxu0 %v381
  %510 = vmatprep.subr.bf16.mxu0 0
  %511 = vmatpush2.bf16.msra.mxu0 %v380
  %512 = vmatprep.subr.bf16.mxu0 0
  %513 = vmatpush2.bf16.msra.mxu0 %v379
  %514 = vmatprep.subr.bf16.mxu0 0
  %515 = vmatpush2.bf16.msra.mxu0 %v378
  %516 = vmatprep.subr.bf16.mxu0 0
  %517 = vmatpush2.bf16.msra.mxu0 %v377
  %518 = vmatprep.subr.bf16.mxu0 0
  %519 = vmatpush2.bf16.msra.mxu0 %v376
  %520 = vmatprep.subr.bf16.mxu0 0
  %521 = vmatpush2.bf16.msra.mxu0 %v375
  %522 = vmatprep.subr.bf16.mxu0 0
  %523 = vmatpush2.bf16.msra.mxu0 %v374
  %524 = vmatprep.mubr.bf16.mxu0 %v144
  %525 = vmatmul.mubr.bf16.gmra.mxu0 %v143
  %v526 = vpop.f32.mrf.mxu0
  %v527 = vadd.f32 %v487, %v526
  %v528 = vpop.f32.mrf.mxu0
  %v529 = vpop.f32.mrf.mxu0
  %v530 = vpop.f32.mrf.mxu0
  %531 = vdwg.mxu0
  %532 = vmatprep.subr.bf16.mxu0 0
  %533 = vmatpush1.bf16.msra.mxu0 %v389
  %534 = vmatprep.subr.bf16.mxu0 0
  %535 = vmatpush1.bf16.msra.mxu0 %v388
  %536 = vmatprep.subr.bf16.mxu0 0
  %537 = vmatpush1.bf16.msra.mxu0 %v387
  %538 = vmatprep.subr.bf16.mxu0 0
  %539 = vmatpush1.bf16.msra.mxu0 %v386
  %540 = vmatprep.subr.bf16.mxu0 0
  %541 = vmatpush1.bf16.msra.mxu0 %v385
  %542 = vmatprep.subr.bf16.mxu0 0
  %543 = vmatpush1.bf16.msra.mxu0 %v384
  %544 = vmatprep.subr.bf16.mxu0 0
  %545 = vmatpush1.bf16.msra.mxu0 %v383
  %546 = vmatprep.subr.bf16.mxu0 0
  %547 = vmatpush1.bf16.msra.mxu0 %v382
  %548 = vmatprep.subr.bf16.mxu0 0
  %549 = vmatpush2.bf16.msra.mxu0 %v397
  %550 = vmatprep.subr.bf16.mxu0 0
  %551 = vmatpush2.bf16.msra.mxu0 %v396
  %552 = vmatprep.subr.bf16.mxu0 0
  %553 = vmatpush2.bf16.msra.mxu0 %v395
  %554 = vmatprep.subr.bf16.mxu0 0
  %555 = vmatpush2.bf16.msra.mxu0 %v394
  %556 = vmatprep.subr.bf16.mxu0 0
  %557 = vmatpush2.bf16.msra.mxu0 %v393
  %558 = vmatprep.subr.bf16.mxu0 0
  %559 = vmatpush2.bf16.msra.mxu0 %v392
  %560 = vmatprep.subr.bf16.mxu0 0
  %561 = vmatpush2.bf16.msra.mxu0 %v391
  %562 = vmatprep.subr.bf16.mxu0 0
  %563 = vmatpush2.bf16.msra.mxu0 %v390
  %564 = vmatprep.mubr.bf16.mxu0 %v146
  %565 = vmatmul.mubr.bf16.gmra.mxu0 %v145
  %v566 = vpop.f32.mrf.mxu0
  %v567 = vadd.f32 %v527, %v566
  %v568 = vpop.f32.mrf.mxu0
  %v569 = vpop.f32.mrf.mxu0
  %v570 = vpop.f32.mrf.mxu0
  %571 = vdwg.mxu0
  %572 = vmatprep.subr.bf16.mxu0 0
  %573 = vmatpush1.bf16.msra.mxu0 0
  %574 = vmatprep.subr.bf16.mxu0 0
  %575 = vmatpush1.bf16.msra.mxu0 0
  %576 = vmatprep.subr.bf16.mxu0 0
  %577 = vmatpush1.bf16.msra.mxu0 0
  %578 = vmatprep.subr.bf16.mxu0 0
  %579 = vmatpush1.bf16.msra.mxu0 0
  %580 = vmatprep.subr.bf16.mxu0 0
  %581 = vmatpush1.bf16.msra.mxu0 0
  %582 = vmatprep.subr.bf16.mxu0 0
  %583 = vmatpush1.bf16.msra.mxu0 0
  %584 = vmatprep.subr.bf16.mxu0 0
  %585 = vmatpush1.bf16.msra.mxu0 0
  %586 = vmatprep.subr.bf16.mxu0 0
  %587 = vmatpush1.bf16.msra.mxu0 %v398
  %588 = vmatprep.subr.bf16.mxu0 0
  %589 = vmatpush2.bf16.msra.mxu0 0
  %590 = vmatprep.subr.bf16.mxu0 0
  %591 = vmatpush2.bf16.msra.mxu0 0
  %592 = vmatprep.subr.bf16.mxu0 0
  %593 = vmatpush2.bf16.msra.mxu0 0
  %594 = vmatprep.subr.bf16.mxu0 0
  %595 = vmatpush2.bf16.msra.mxu0 0
  %596 = vmatprep.subr.bf16.mxu0 0
  %597 = vmatpush2.bf16.msra.mxu0 0
  %598 = vmatprep.subr.bf16.mxu0 0
  %599 = vmatpush2.bf16.msra.mxu0 0
  %600 = vmatprep.subr.bf16.mxu0 0
  %601 = vmatpush2.bf16.msra.mxu0 0
  %602 = vmatprep.subr.bf16.mxu0 0
  %603 = vmatpush2.bf16.msra.mxu0 0
  %604 = vmatprep.mubr.bf16.mxu0 0
  %605 = vmatmul.mubr.bf16.gmra.mxu0 %v450
  %v606 = vpop.f32.mrf.mxu0
  %v607 = vadd.f32 %v567, %v606
  %v608 = vpop.f32.mrf.mxu0
  %v609 = vpop.f32.mrf.mxu0
  %v610 = vpop.f32.mrf.mxu0
  %611 = vdwg.mxu0
  %v612 = vmax.f32 %v607, 0.0
  %v613 = vld [vmem:[%s3] sm:$0xff]
  %v614 = vld [vmem:[%s3 + $0x8] sm:$0xff]
  %v615 = vld [vmem:[%s3 + $0x10] sm:$0xff]
  %v616 = vld [vmem:[%s3 + $0x18] sm:$0x3f]
  %v617 = vld [vmem:[%s4] sm:$0x1]
  %v619 = vlaneseq
  %v620 = vshrl.u32 %v619, 7
  %v621 = vsub.s32 0, %v620
  %v622 = vrot.slane %v617, %v621
  %vm624 = vcmask 244736
  %v626 = vsel %vm624, %v612, 0
  %vm628 = vcmask 1045504
  %v630 = vsel %vm628, %v616, 0
  %632 = vmatprep.subr.mxu0 0.0
  %633 = vmatpush1.msra.mxu0 0.0
  %634 = vmatprep.subr.mxu0 0.0
  %635 = vmatpush1.msra.mxu0 0.0
  %636 = vmatprep.subr.mxu0 0.0
  %637 = vmatpush1.msra.mxu0 0.0
  %638 = vmatprep.subr.mxu0 0.0
  %639 = vmatpush1.msra.mxu0 0.0
  %640 = vmatprep.subr.mxu0 0.0
  %641 = vmatpush1.msra.mxu0 0.0
  %642 = vmatprep.subr.mxu0 0.0
  %643 = vmatpush1.msra.mxu0 0.0
  %644 = vmatprep.subr.mxu0 0.0
  %645 = vmatpush1.msra.mxu0 0.0
  %646 = vmatprep.subr.mxu0 0.0
  %647 = vmatpush1.msra.mxu0 0.0
  %648 = vmatprep.subr.mxu0 0.0
  %649 = vmatpush1.msra.mxu0 0.0
  %650 = vmatprep.subr.mxu0 0.0
  %651 = vmatpush1.msra.mxu0 0.0
  %652 = vmatprep.subr.mxu0 0.0
  %653 = vmatpush1.msra.mxu0 0.0
  %654 = vmatprep.subr.mxu0 0.0
  %655 = vmatpush1.msra.mxu0 0.0
  %656 = vmatprep.subr.mxu0 0.0
  %657 = vmatpush1.msra.mxu0 %v630
  %658 = vmatprep.subr.mxu0 0.0
  %659 = vmatpush1.msra.mxu0 %v615
  %660 = vmatprep.subr.mxu0 0.0
  %661 = vmatpush1.msra.mxu0 %v614
  %662 = vmatprep.subr.mxu0 0.0
  %663 = vmatpush1.msra.mxu0 %v613
  %664 = vmatprep.subr.mxu0 0.0
  %665 = vmatpush2.msra.mxu0 0.0
  %666 = vmatprep.subr.mxu0 0.0
  %667 = vmatpush2.msra.mxu0 0.0
  %668 = vmatprep.subr.mxu0 0.0
  %669 = vmatpush2.msra.mxu0 0.0
  %670 = vmatprep.subr.mxu0 0.0
  %671 = vmatpush2.msra.mxu0 0.0
  %672 = vmatprep.subr.mxu0 0.0
  %673 = vmatpush2.msra.mxu0 0.0
  %674 = vmatprep.subr.mxu0 0.0
  %675 = vmatpush2.msra.mxu0 0.0
  %676 = vmatprep.subr.mxu0 0.0
  %677 = vmatpush2.msra.mxu0 0.0
  %678 = vmatprep.subr.mxu0 0.0
  %679 = vmatpush2.msra.mxu0 0.0
  %680 = vmatprep.subr.mxu0 0.0
  %681 = vmatpush2.msra.mxu0 0.0
  %682 = vmatprep.subr.mxu0 0.0
  %683 = vmatpush2.msra.mxu0 0.0
  %684 = vmatprep.subr.mxu0 0.0
  %685 = vmatpush2.msra.mxu0 0.0
  %686 = vmatprep.subr.mxu0 0.0
  %687 = vmatpush2.msra.mxu0 0.0
  %688 = vmatprep.subr.mxu0 0.0
  %689 = vmatpush2.msra.mxu0 0.0
  %690 = vmatprep.subr.mxu0 0.0
  %691 = vmatpush2.msra.mxu0 0.0
  %692 = vmatprep.subr.mxu0 0.0
  %693 = vmatpush2.msra.mxu0 0.0
  %694 = vmatprep.subr.mxu0 0.0
  %695 = vmatpush2.msra.mxu0 0.0
  %696 = vmatprep.mubr.f32.mxu0 0.0
  %697 = vmatmul.mubr.f32.gmra.mxu0 %v626
  %v698 = vpop.f32.mrf.mxu0
  %v699 = vadd.f32 %v622, %v698
  %v700 = vpop.f32.mrf.mxu0
  %701 = vdwg.mxu0
  %702 = vmax.xlane.f32.xlu0 %v699
  %v703 = vpop.xlane.xlu0 %702
  %v704 = vsub.f32 %v699, %v703
  %v705 = vmul.f32 %v704, 1.442695
  %v706 = vpow.pop %v705
  %707 = vadd.xlane.f32.xlu0 %v706
  %v708 = vpop.xlane.xlu0 %707
  %v709 = vrcp.pop %v708
  %v710 = vmul.f32 %v706, %v709
  %711 = vst [vmem:[%s5] sm:$0xff] %v710
  // Predicated region
  $region22: #{mnist_encoder_forward.1} parent=0 // pred_check
    _
  $region23: #{mnist_encoder_forward.1} parent=0 // pred_check_branch
    %713 = sbr.rel (0) target = $region25
  $region24: #{mnist_encoder_forward.1} parent=0 // pred_region
    _
  $region25: #{mnist_encoder_forward.1} parent=0 // pred_fallthru
    _
  // Predicated region
  $region26: #{mnist_encoder_forward.1} parent=0 // pred_check
    _
  $region27: #{mnist_encoder_forward.1} parent=0 // pred_check_branch
    %715 = sbr.rel (0) target = $region29
  $region28: #{mnist_encoder_forward.1} parent=0 // pred_region
    _
  $region29: #{mnist_encoder_forward.1} parent=0 // pred_fallthru
    _

</llo_original>
